<compile_context>
chip_gen: v6e
topology: v6e:2x2x1
jax: 0.10.0
libtpu: 0.0.40
codegen_flags: <defaults>
</compile_context>

<pallas_src>
import jax
import jax.numpy as jnp
from jax.experimental import pallas as pl
from jax.experimental.pallas import tpu as pltpu


# ----------------------------------------------------------------------------- helpers
def _round_up(v, m):
    return ((v + m - 1) // m) * m


def _default_nsplit():
    """2 only where two TensorCores sit behind one JAX device (v4 / v5p / v7x
    megacore); 1 on single-TC chips (v5e / v6e), where a 'parallel' grid axis is
    just an outer sequential loop with extra finalize + padding granularity."""
    try:
        kind = jax.devices()[0].device_kind.lower()
    except Exception:
        return 1
    return 2 if any(t in kind for t in ("v4", "v5p", "v7", "7x")) else 1


def _plan(n, nsplit, tn_max):
    """Adaptive lane tile (perf-review items 2, 3, 7):
       - big enough to amortize the ~0.35 us/step grid overhead,
       - clamped to the problem so small N pads at most ~one 1024-lane granule,
       - capped so total VMEM (~84*tn bytes) stays inside the 32 MiB scoped
         default on every generation (v7x's 64 MiB physical included)."""
    tn = max(1024, min(tn_max, _round_up(pl.cdiv(n, nsplit), 1024)))
    steps = pl.cdiv(n, nsplit * tn)
    n_pad = nsplit * tn * steps
    return tn, steps, n_pad


def collapse_encoder(w1, b1, w2, b2):
    """Exact algebraic collapse of Linear(6,3) -> Linear(3,1). Weights stored (in, out)."""
    hi = jax.lax.Precision.HIGHEST
    w_eff = jnp.dot(w1.astype(jnp.float32), w2.astype(jnp.float32),
                    precision=hi).reshape(6, 1)
    b_eff = (jnp.dot(b1.astype(jnp.float32), w2.astype(jnp.float32),
                     precision=hi) + b2.astype(jnp.float32)).reshape(1, 1)
    return w_eff, b_eff


# ----------------------------------------------------------------------------- kernel
def _weighted_colsum_kernel(xT_ref, gs_ref, w_ref, b_ref, out_ref,
                            accx_ref, accg_ref):
    # xT_ref: (6, TN)   gs_ref: (1, TN)   w_ref: (6, 1) VMEM   b_ref: (1, 1) SMEM
    # out_ref: (8, 128)  accx_ref: (6, TN) f32  accg_ref: (1, TN) f32
    i = pl.program_id(1)                       # reduction ("arbitrary") axis

    @pl.when(i == 0)
    def _init():
        accx_ref[...] = jnp.zeros_like(accx_ref)
        accg_ref[...] = jnp.zeros_like(accg_ref)

    # Per-step: pure lane-dense VPU multiply-accumulate; no cross-lane work, no MXU.
    gs = gs_ref[...]                           # (1, TN)
    accx_ref[...] += xT_ref[...] * gs          # gs broadcast over the 6 sublanes
    accg_ref[...] += gs

    @pl.when(i == pl.num_programs(1) - 1)
    def _finalize():
        s6 = jnp.sum(accx_ref[...], axis=1, keepdims=True)       # (6, 1)
        gsum = jnp.sum(accg_ref[...], axis=1, keepdims=True)     # (1, 1)
        part = jnp.sum(s6 * w_ref[...], axis=0, keepdims=True)   # (1, 1)
        total = part + b_ref[0, 0] * gsum                        # (1, 1)
        # Lane-dense full-block store (no masked vst); wrapper reads lane 0 of
        # each split.  NOTE: writing out_ref only here is safe because the output
        # block index is constant along the reduction axis — keep that invariant.
        out_ref[...] = jnp.broadcast_to(total, out_ref.shape)


# ----------------------------------------------------------------------------- wrappers
def pack_inputs(x, group_sizes, *, nsplit=None, tn_max=131072):
    """One-time layout pass: (N,6) x / (N,) gs  ->  lane-dense (6, n_pad) / (1, n_pad).

    This is the only extra HBM pass in the pipeline (~read 28N + write 28*n_pad).
    If x / group_sizes are reused across calls, build this ONCE and call
    `yield_linear_model_packed` — the kernel then runs at its ~28 B/row ideal.
    Padded gs lanes are exactly zero, which neutralizes both the weighted column
    sum and the b_eff * sum(gs) term.
    """
    n = x.shape[0]
    nsplit = _default_nsplit() if nsplit is None else nsplit
    tn, steps, n_pad = _plan(n, nsplit, tn_max)
    pad = n_pad - n
    xT = jnp.pad(x.astype(jnp.float32).T, ((0, 0), (0, pad)))              # (6, n_pad)
    gsp = jnp.pad(group_sizes.astype(jnp.float32).reshape(1, n),
                  ((0, 0), (0, pad)))                                      # (1, n_pad)
    return (xT, gsp), (n, nsplit, tn, steps)


def yield_linear_model_packed(packed, plan, w1, b1, w2, b2):
    """Run the kernel on pre-packed inputs (see pack_inputs). Returns a scalar f32."""
    xT, gsp = packed
    _, nsplit, tn, steps = plan
    n_pad = nsplit * tn * steps
    w_eff, b_eff = collapse_encoder(w1, b1, w2, b2)

    out = pl.pallas_call(
        _weighted_colsum_kernel,
        out_shape=jax.ShapeDtypeStruct((8, 128 * nsplit), jnp.float32),
        grid=(nsplit, steps),
        in_specs=[
            pl.BlockSpec((6, tn), lambda c, i: (0, c * steps + i)),
            pl.BlockSpec((1, tn), lambda c, i: (0, c * steps + i)),
            pl.BlockSpec((6, 1), lambda c, i: (0, 0)),            # W_eff (resident)
            pl.BlockSpec(memory_space=pltpu.MemorySpace.SMEM),    # b_eff scalar
        ],
        out_specs=pl.BlockSpec((8, 128), lambda c, i: (0, c)),
        scratch_shapes=[
            pltpu.VMEM((6, tn), jnp.float32),   # gs-weighted column-sum accumulator
            pltpu.VMEM((1, tn), jnp.float32),   # sum(gs) accumulator
        ],
        compiler_params=pltpu.CompilerParams(
            # On v7x, if the dump shows axis 0 not split across the 2 TCs,
            # switch to (pltpu.CORE_PARALLEL, "arbitrary").
            dimension_semantics=("parallel", "arbitrary"),
            vmem_limit_bytes=32 * 1024 * 1024,   # safe on all gens incl. v7x
        ),
        cost_estimate=pl.CostEstimate(
            flops=14 * n_pad, transcendentals=0, bytes_accessed=28 * n_pad),
    )(xT, gsp, w_eff, b_eff)

    # Each parallel split broadcast its partial across its own 128-lane block.
    return jnp.sum(out[0, ::128])


def yield_linear_model(x, group_sizes, w1, b1, w2, b2, *, nsplit=None, tn_max=131072):
    """Convenience one-shot entry point: pack (one layout pass) + kernel.
    x: (N, 6) f32; group_sizes: (N,) f32; weights stored (in, out). -> scalar f32."""
    packed, plan = pack_inputs(x, group_sizes, nsplit=nsplit, tn_max=tn_max)
    return yield_linear_model_packed(packed, plan, w1, b1, w2, b2)


# ----------------------------------------------------------------------------- demo / test
def init_params(key):
    """Mimic nn.Linear's uniform(-1/sqrt(fan_in), 1/sqrt(fan_in)); stored (in, out)."""
    k1, k2, k3, k4 = jax.random.split(key, 4)
    bd1, bd2 = 1.0 / jnp.sqrt(6.0), 1.0 / jnp.sqrt(3.0)
    w1 = jax.random.uniform(k1, (6, 3), jnp.float32, -bd1, bd1)
    b1 = jax.random.uniform(k2, (3,), jnp.float32, -bd1, bd1)
    w2 = jax.random.uniform(k3, (3, 1), jnp.float32, -bd2, bd2)
    b2 = jax.random.uniform(k4, (1,), jnp.float32, -bd2, bd2)
    return w1, b1, w2, b2


def _reference(x, gs, w1, b1, w2, b2):
    hi = jax.lax.Precision.HIGHEST
    pred = jnp.dot(jnp.dot(x, w1, precision=hi) + b1, w2, precision=hi) + b2
    return jnp.sum(pred.reshape(-1) * gs)


if __name__ == "__main__":
    key = jax.random.PRNGKey(0)
    kx, kg, kp, kp2, kx2, kg2 = jax.random.split(key, 6)

    w1, b1, w2, b2 = init_params(kp)

    # Small demo (a handful of (department, year) samples). At N=8 the call is
    # pure launch/DMA latency; the adaptive tiling above targets large-N use.
    N = 8
    x = jax.random.normal(kx, (N, 6), jnp.float32)
    gs = jax.random.uniform(kg, (N,), jnp.float32, 0.5, 2.0)

    result = yield_linear_model(x, gs, w1, b1, w2, b2)
    jax.block_until_ready(result)
    expected = _reference(x, gs, w1, b1, w2, b2)
    assert jnp.allclose(result, expected, rtol=1e-5, atol=1e-5), (result, expected)

    # Larger check: exercises the adaptive tile clamp, N padding, and the
    # pack-once / run-many amortized path (perf-review item 1).
    N2 = 5000
    x2 = jax.random.normal(kx2, (N2, 6), jnp.float32)
    gs2 = jax.random.uniform(kg2, (N2,), jnp.float32, 0.5, 2.0)

    packed2, plan2 = pack_inputs(x2, gs2)                 # one-time layout pass
    result2 = yield_linear_model_packed(packed2, plan2, w1, b1, w2, b2)
    jax.block_until_ready(result2)
    expected2 = _reference(x2, gs2, w1, b1, w2, b2)
    assert jnp.allclose(result2, expected2, rtol=1e-4, atol=1e-3), (result2, expected2)

    # Reuse the cached packed layout with different encoder weights (no re-pack).
    w1b, b1b, w2b, b2b = init_params(kp2)
    result3 = yield_linear_model_packed(packed2, plan2, w1b, b1b, w2b, b2b)
    jax.block_until_ready(result3)
    expected3 = _reference(x2, gs2, w1b, b1b, w2b, b2b)
    assert jnp.allclose(result3, expected3, rtol=1e-4, atol=1e-3), (result3, expected3)

    print("KERNEL_OK")
</pallas_src>

<mosaic_0001>
module attributes {stable_mosaic.version = 11 : i64} {
  func.func @_weighted_colsum_kernel(%arg0: i32, %arg1: i32, %arg2: memref<6x1024xf32, #tpu.memory_space<vmem>>, %arg3: memref<1x1024xf32, #tpu.memory_space<vmem>>, %arg4: memref<6x1xf32, #tpu.memory_space<vmem>>, %arg5: memref<1x1xf32, #tpu.memory_space<smem>>, %arg6: memref<8x128xf32, #tpu.memory_space<vmem>>, %arg7: memref<6x1024xf32, #tpu.memory_space<vmem>>, %arg8: memref<1x1024xf32, #tpu.memory_space<vmem>>) attributes {dimension_semantics = [#tpu.dimension_semantics<parallel>, #tpu.dimension_semantics<arbitrary>], iteration_bounds = array<i64: 1, 1>, scalar_prefetch = 0 : i64, scratch_operands = 2 : i64, tpu.core_type = #tpu.core_type<tc>, window_params = [{transform_indices = @transform_0, window_bounds = array<i64: 6, 1024>}, {transform_indices = @transform_1, window_bounds = array<i64: 1, 1024>}, {pipeline_mode = #tpu.pipeline_mode<synchronous>, transform_indices = @transform_2, window_bounds = array<i64: 6, 1>}, {transform_indices = @transform_3, window_bounds = array<i64: 1, 1>}, {transform_indices = @transform_4, window_bounds = array<i64: 8, 128>}]} {
    %c0_i32 = arith.constant 0 : i32
    %0 = arith.cmpi eq, %arg1, %c0_i32 : i32
    %1 = arith.extui %0 : i1 to i32
    %c0_i32_0 = arith.constant 0 : i32
    %2 = arith.cmpi ne, %1, %c0_i32_0 : i32
    scf.if %2 {
      %cst = arith.constant 0.000000e+00 : f32
      %16 = vector.broadcast %cst : f32 to vector<6x1024xf32>
      %c0_14 = arith.constant 0 : index
      %c0_15 = arith.constant 0 : index
      %17 = vector.load %arg7[%c0_14, %c0_15] : memref<6x1024xf32, #tpu.memory_space<vmem>>, vector<6x1024xf32>
      tpu.vector_store %arg7[%c0_14, %c0_15], %16 {strides = array<i32>} : memref<6x1024xf32, #tpu.memory_space<vmem>>, vector<6x1024xf32>,
      %cst_16 = arith.constant 0.000000e+00 : f32
      %18 = vector.broadcast %cst_16 : f32 to vector<1x1024xf32>
      %c0_17 = arith.constant 0 : index
      %c0_18 = arith.constant 0 : index
      %19 = vector.load %arg8[%c0_17, %c0_18] : memref<1x1024xf32, #tpu.memory_space<vmem>>, vector<1x1024xf32>
      tpu.vector_store %arg8[%c0_17, %c0_18], %18 {strides = array<i32>} : memref<1x1024xf32, #tpu.memory_space<vmem>>, vector<1x1024xf32>,
    } else {
    }
    %c0 = arith.constant 0 : index
    %c0_1 = arith.constant 0 : index
    %3 = vector.load %arg3[%c0, %c0_1] : memref<1x1024xf32, #tpu.memory_space<vmem>>, vector<1x1024xf32>
    %c0_2 = arith.constant 0 : index
    %c0_3 = arith.constant 0 : index
    %4 = vector.load %arg7[%c0_2, %c0_3] : memref<6x1024xf32, #tpu.memory_space<vmem>>, vector<6x1024xf32>
    %c0_4 = arith.constant 0 : index
    %c0_5 = arith.constant 0 : index
    %5 = vector.load %arg2[%c0_4, %c0_5] : memref<6x1024xf32, #tpu.memory_space<vmem>>, vector<6x1024xf32>
    %6 = vector.broadcast %3 : vector<1x1024xf32> to vector<6x1024xf32>
    %7 = arith.mulf %5, %6 : vector<6x1024xf32>
    %8 = arith.addf %4, %7 : vector<6x1024xf32>
    %c0_6 = arith.constant 0 : index
    %c0_7 = arith.constant 0 : index
    %9 = vector.load %arg7[%c0_6, %c0_7] : memref<6x1024xf32, #tpu.memory_space<vmem>>, vector<6x1024xf32>
    tpu.vector_store %arg7[%c0_6, %c0_7], %8 {strides = array<i32>} : memref<6x1024xf32, #tpu.memory_space<vmem>>, vector<6x1024xf32>,
    %c0_8 = arith.constant 0 : index
    %c0_9 = arith.constant 0 : index
    %10 = vector.load %arg8[%c0_8, %c0_9] : memref<1x1024xf32, #tpu.memory_space<vmem>>, vector<1x1024xf32>
    %11 = arith.addf %10, %3 : vector<1x1024xf32>
    %c0_10 = arith.constant 0 : index
    %c0_11 = arith.constant 0 : index
    %12 = vector.load %arg8[%c0_10, %c0_11] : memref<1x1024xf32, #tpu.memory_space<vmem>>, vector<1x1024xf32>
    tpu.vector_store %arg8[%c0_10, %c0_11], %11 {strides = array<i32>} : memref<1x1024xf32, #tpu.memory_space<vmem>>, vector<1x1024xf32>,
    %c0_i32_12 = arith.constant 0 : i32
    %13 = arith.cmpi eq, %arg1, %c0_i32_12 : i32
    %14 = arith.extui %13 : i1 to i32
    %c0_i32_13 = arith.constant 0 : i32
    %15 = arith.cmpi ne, %14, %c0_i32_13 : i32
    scf.if %15 {
      %c0_14 = arith.constant 0 : index
      %c0_15 = arith.constant 0 : index
      %16 = vector.load %arg7[%c0_14, %c0_15] : memref<6x1024xf32, #tpu.memory_space<vmem>>, vector<6x1024xf32>
      %cst = arith.constant dense<0.000000e+00> : vector<6xf32>
      %17 = vector.multi_reduction <add>, %16, %cst [1] : vector<6x1024xf32> to vector<6xf32>
      %18 = vector.shape_cast %17 : vector<6xf32> to vector<6x1xf32>
      %c0_16 = arith.constant 0 : index
      %c0_17 = arith.constant 0 : index
      %19 = vector.load %arg8[%c0_16, %c0_17] : memref<1x1024xf32, #tpu.memory_space<vmem>>, vector<1x1024xf32>
      %cst_18 = arith.constant dense<0.000000e+00> : vector<1xf32>
      %20 = vector.multi_reduction <add>, %19, %cst_18 [1] : vector<1x1024xf32> to vector<1xf32>
      %21 = vector.shape_cast %20 : vector<1xf32> to vector<1x1xf32>
      %c0_19 = arith.constant 0 : index
      %c0_20 = arith.constant 0 : index
      %22 = vector.load %arg4[%c0_19, %c0_20] : memref<6x1xf32, #tpu.memory_space<vmem>>, vector<6x1xf32>
      %23 = arith.mulf %18, %22 : vector<6x1xf32>
      %cst_21 = arith.constant dense<0.000000e+00> : vector<1xf32>
      %24 = vector.multi_reduction <add>, %23, %cst_21 [0] : vector<6x1xf32> to vector<1xf32>
      %25 = vector.shape_cast %24 : vector<1xf32> to vector<1x1xf32>
      %c0_22 = arith.constant 0 : index
      %c0_23 = arith.constant 0 : index
      %26 = memref.load %arg5[%c0_22, %c0_23] : memref<1x1xf32, #tpu.memory_space<smem>>
      %27 = vector.broadcast %26 : f32 to vector<1x1xf32>
      %28 = arith.mulf %27, %21 : vector<1x1xf32>
      %29 = arith.addf %25, %28 : vector<1x1xf32>
      %30 = vector.shape_cast %29 : vector<1x1xf32> to vector<1x1xf32>
      %31 = vector.broadcast %30 : vector<1x1xf32> to vector<8x128xf32>
      %c0_24 = arith.constant 0 : index
      %c0_25 = arith.constant 0 : index
      %32 = vector.load %arg6[%c0_24, %c0_25] : memref<8x128xf32, #tpu.memory_space<vmem>>, vector<8x128xf32>
      tpu.vector_store %arg6[%c0_24, %c0_25], %31 {strides = array<i32>} : memref<8x128xf32, #tpu.memory_space<vmem>>, vector<8x128xf32>,
    } else {
    }
    return
  }
  func.func @transform_0(%arg0: i32, %arg1: i32) -> (i32, i32) {
    %c1_i32 = arith.constant 1 : i32
    %0 = arith.muli %arg0, %c1_i32 : i32
    %1 = arith.addi %0, %arg1 : i32
    %c0_i32 = arith.constant 0 : i32
    %c0_i32_0 = arith.constant 0 : i32
    return %c0_i32, %1 : i32, i32
  }
  func.func @transform_1(%arg0: i32, %arg1: i32) -> (i32, i32) {
    %c1_i32 = arith.constant 1 : i32
    %0 = arith.muli %arg0, %c1_i32 : i32
    %1 = arith.addi %0, %arg1 : i32
    %c0_i32 = arith.constant 0 : i32
    %c0_i32_0 = arith.constant 0 : i32
    return %c0_i32, %1 : i32, i32
  }
  func.func @transform_2(%arg0: i32, %arg1: i32) -> (i32, i32) {
    %c0_i32 = arith.constant 0 : i32
    %c0_i32_0 = arith.constant 0 : i32
    %c0_i32_1 = arith.constant 0 : i32
    return %c0_i32, %c0_i32_0 : i32, i32
  }
  func.func @transform_3(%arg0: i32, %arg1: i32) -> (i32, i32) {
    %c0_i32 = arith.constant 0 : i32
    %c0_i32_0 = arith.constant 0 : i32
    %c0_i32_1 = arith.constant 0 : i32
    return %c0_i32, %c0_i32_0 : i32, i32
  }
  func.func @transform_4(%arg0: i32, %arg1: i32) -> (i32, i32) {
    %c0_i32 = arith.constant 0 : i32
    %c0_i32_0 = arith.constant 0 : i32
    return %c0_i32, %arg0 : i32, i32
  }
}

</mosaic_0001>

<llo_original>
// kernel: tpu_custom_call.1
$region0: #{tpu_custom_call.1}
  #allocation0 [shape = 'u32[]', space=smem, size = 0x4, offset = 0x4, fixed_abs, tag = 'smem constant byte address 0x4 - core index']
  #allocation1 [shape = 'u32[144,128]{1,0:T(1,128)}', space=vmem, size = 0x12000, scoped, tag = 'internal scratch']
  #allocation2 [shape = 'f32[6,1024]{1,0:T(8,128)}', space=vmem, size = 0x8000, scoped, tag = 'scratch operand']
  #allocation3 [shape = 'f32[1,1024]{1,0:T(1,128)}', space=vmem, size = 0x1000, scoped, tag = 'scratch operand']
  #allocation4 [shape = 'f32[1,1]{1,0:T(1,128)S(6)}', space=smem, size = 0x200, scoped, tag = 'scoped memory for tpu_custom_call.1']
  %s0 = inlined_call_operand.hbm [shape: f32[6,1024], index: 0, kind: input, shape index: {}]
  %s1 = inlined_call_operand.vmem [shape: f32[1,1024], index: 1, kind: input, shape index: {}]
  %s2 = inlined_call_operand.vmem [shape: f32[6,1], index: 2, kind: input, shape index: {}]
  %s3 = inlined_call_operand.<no memory space> [shape: f32[1,1], index: 3, kind: input, shape index: {}]
  %s4 = inlined_call_operand.hbm [shape: f32[8,128], index: 4, kind: output, shape index: {}]
  %s5 = sld [smem:[#allocation0]]
  $region38: #{tpu_custom_call.1} parent=0
    _
  %s7 = ssub.s32 1, %s5
  %s8 = scalar_select 0, %s7, %s5
  %9 = sst [smem:[#allocation4]] %s3
  $region1: #{tpu_custom_call.1} parent=0
    #allocation5 [shape = 'u8[32768]{0}', space=vmem, size = 0x8000, scoped, tag = 'input window, operand 0, single buffered']
    #allocation6 [shape = 's32[1]{0}', space=sflag, size = 0x4, scoped, tag = 'scoped memory for tpu_custom_call.1']
    #allocation7 [shape = 's32[1]{0}', space=sflag, size = 0x4, scoped, tag = 'scoped memory for tpu_custom_call.1']
    #allocation8 [shape = 'u8[4096]{0}', space=vmem, size = 0x1000, scoped, tag = 'output window, operand 0, single buffered']
    %10 = vsyncpa [#allocation6], 0
    %11 = vsyncpa [#allocation7], 0
    // Predicated region
    $region2: #{tpu_custom_call.1} parent=1 // pred_check
      _
    $region3: #{tpu_custom_call.1} parent=1 // pred_check_branch
      %13 = sbr.rel (0) target = $region5
    $region4: #{tpu_custom_call.1} parent=1 // pred_region
      %s14 = sadd.s32 0, 0
      %s15 = smul.u32 8, %s14
      %s17 = ssub.s32 1024, 1024
      %18 = vsyncadd [#allocation6], %s17
      %s19 = smul.addr %s15, 128
      %s20 = scalar_lea.hbm %s0, %s19
      %s22 = sshll.u32 [#allocation5], 4
      %s23 = int_to_ptr.vmem [resolvable:$true] %s22
      %25 = dma.hbm_to_vmem [thread:$0]  %s20, 1024, %s23, [#allocation6]
    $region5: #{tpu_custom_call.1} parent=1 // pred_fallthru
      _
    // Predicated region
    $region6: #{tpu_custom_call.1} parent=1 // pred_check
      _
    $region7: #{tpu_custom_call.1} parent=1 // pred_check_branch
      %27 = sbr.rel (0) target = $region9
    $region8: #{tpu_custom_call.1} parent=1 // pred_region
      %s28 = sadd.s32 0, 0
      %s29 = smul.u32 8, %s28
      %p30 = scmp.lt.s32.totalorder %s29, 7
      %s31 = scalar_select %p30, %s29, 7
      %s32 = scalar_lea.vmem %s1, %s31
      %s33 = sadd.s32 0, 0
      %s34 = smul.u32 8, %s33
    $region9: #{tpu_custom_call.1} parent=1 // pred_fallthru
      _
    // Predicated region
    $region10: #{tpu_custom_call.1} parent=1 // pred_check
      _
    $region11: #{tpu_custom_call.1} parent=1 // pred_check_branch
      %36 = sbr.rel (0) target = $region13
    $region12: #{tpu_custom_call.1} parent=1 // pred_region
      _
    $region13: #{tpu_custom_call.1} parent=1 // pred_fallthru
      _
    // Predicated region
    $region14: #{tpu_custom_call.1} parent=1 // pred_check
      _
    $region15: #{tpu_custom_call.1} parent=1 // pred_check_branch
      %38 = sbr.rel (0) target = $region17
    $region16: #{tpu_custom_call.1} parent=1 // pred_region
      _
    $region17: #{tpu_custom_call.1} parent=1 // pred_fallthru
      _
    // Predicated region
    $region18: #{tpu_custom_call.1} parent=1 // pred_check
      _
    $region19: #{tpu_custom_call.1} parent=1 // pred_check_branch
      %40 = sbr.rel (0) target = $region21
    $region20: #{tpu_custom_call.1} parent=1 // pred_region
      %41 = dma.done [#allocation6], 1024
    $region21: #{tpu_custom_call.1} parent=1 // pred_fallthru
      _
    %s42 = sadd.s32 0, 0
    %s43 = smul.u32 8, %s42
    %p44 = scmp.lt.s32.totalorder %s43, 7
    %s45 = scalar_select %p44, %s43, 7
    %s46 = scalar_lea.vmem %s1, %s45
    %s47 = sadd.s32 0, 0
    %s48 = smul.u32 8, %s47
    %s49 = sadd.s32 0, 0
    %s50 = smul.u32 8, %s49
    %p51 = scmp.lt.s32.totalorder %s50, 7
    %s52 = scalar_select %p51, %s50, 7
    %s53 = scalar_lea.vmem %s1, %s52
    %s54 = sadd.s32 0, 0
    %s55 = smul.u32 8, %s54
    %p56 = scmp.eq.s32.totalorder 0, 0
    // Predicated region
    $region22: #{tpu_custom_call.1} parent=1 // pred_check
      %p57 = pneg %p56
    $region23: #{tpu_custom_call.1} parent=1 // pred_check_branch
      %59 = sbr.rel (%p57) target = $region25
    $region24: #{tpu_custom_call.1} parent=1 // pred_region
      %60 = vst [vmem:[#allocation2] sm:$0x3f] 0.0
      %61 = vst [vmem:[#allocation2 + $0x8] sm:$0x3f] 0.0
      %62 = vst [vmem:[#allocation2 + $0x10] sm:$0x3f] 0.0
      %63 = vst [vmem:[#allocation2 + $0x18] sm:$0x3f] 0.0
      %64 = vst [vmem:[#allocation2 + $0x20] sm:$0x3f] 0.0
      %65 = vst [vmem:[#allocation2 + $0x28] sm:$0x3f] 0.0
      %66 = vst [vmem:[#allocation2 + $0x30] sm:$0x3f] 0.0
      %67 = vst [vmem:[#allocation2 + $0x38] sm:$0x3f] 0.0
      %68 = vst [vmem:[#allocation3] sm:$0xff] 0.0
    $region25: #{tpu_custom_call.1} parent=1 // pred_fallthru
      _
    %v69 = vld [vmem:[%s53] sm:$0xff]
    %v70 = vld [vmem:[#allocation2] sm:$0x3f]
    %v71 = vld [vmem:[#allocation2 + $0x8] sm:$0x3f]
    %v72 = vld [vmem:[#allocation2 + $0x10] sm:$0x3f]
    %v73 = vld [vmem:[#allocation2 + $0x18] sm:$0x3f]
    %v74 = vld [vmem:[#allocation2 + $0x20] sm:$0x3f]
    %v75 = vld [vmem:[#allocation2 + $0x28] sm:$0x3f]
    %v76 = vld [vmem:[#allocation2 + $0x30] sm:$0x3f]
    %v77 = vld [vmem:[#allocation2 + $0x38] sm:$0x3f]
    %v78 = vld [vmem:[#allocation5] sm:$0x3f]
    %v79 = vld [vmem:[#allocation5 + $0x8] sm:$0x3f]
    %v80 = vld [vmem:[#allocation5 + $0x10] sm:$0x3f]
    %v81 = vld [vmem:[#allocation5 + $0x18] sm:$0x3f]
    %v82 = vld [vmem:[#allocation5 + $0x20] sm:$0x3f]
    %v83 = vld [vmem:[#allocation5 + $0x28] sm:$0x3f]
    %v84 = vld [vmem:[#allocation5 + $0x30] sm:$0x3f]
    %v85 = vld [vmem:[#allocation5 + $0x38] sm:$0x3f]
    %v87 = vlaneseq
    %v88 = vshrl.u32 %v87, 7
    %v89 = vsub.s32 0, %v88
    %v90 = vrot.slane %v69, %v89
    %v91 = vlaneseq
    %v92 = vshrl.u32 %v91, 7
    %v93 = vsub.s32 1, %v92
    %v94 = vrot.slane %v69, %v93
    %v95 = vlaneseq
    %v96 = vshrl.u32 %v95, 7
    %v97 = vsub.s32 2, %v96
    %v98 = vrot.slane %v69, %v97
    %v99 = vlaneseq
    %v100 = vshrl.u32 %v99, 7
    %v101 = vsub.s32 3, %v100
    %v102 = vrot.slane %v69, %v101
    %v103 = vlaneseq
    %v104 = vshrl.u32 %v103, 7
    %v105 = vsub.s32 4, %v104
    %v106 = vrot.slane %v69, %v105
    %v107 = vlaneseq
    %v108 = vshrl.u32 %v107, 7
    %v109 = vsub.s32 5, %v108
    %v110 = vrot.slane %v69, %v109
    %v111 = vlaneseq
    %v112 = vshrl.u32 %v111, 7
    %v113 = vsub.s32 6, %v112
    %v114 = vrot.slane %v69, %v113
    %v115 = vlaneseq
    %v116 = vshrl.u32 %v115, 7
    %v117 = vsub.s32 7, %v116
    %v118 = vrot.slane %v69, %v117
    %v127 = vmul.f32 %v78, %v90
    %v128 = vmul.f32 %v79, %v94
    %v129 = vmul.f32 %v80, %v98
    %v130 = vmul.f32 %v81, %v102
    %v131 = vmul.f32 %v82, %v106
    %v132 = vmul.f32 %v83, %v110
    %v133 = vmul.f32 %v84, %v114
    %v134 = vmul.f32 %v85, %v118
    %v135 = vadd.f32 %v70, %v127
    %v136 = vadd.f32 %v71, %v128
    %v137 = vadd.f32 %v72, %v129
    %v138 = vadd.f32 %v73, %v130
    %v139 = vadd.f32 %v74, %v131
    %v140 = vadd.f32 %v75, %v132
    %v141 = vadd.f32 %v76, %v133
    %v142 = vadd.f32 %v77, %v134
    %143 = vst [vmem:[#allocation2] sm:$0x3f] %v135
    %144 = vst [vmem:[#allocation2 + $0x8] sm:$0x3f] %v136
    %145 = vst [vmem:[#allocation2 + $0x10] sm:$0x3f] %v137
    %146 = vst [vmem:[#allocation2 + $0x18] sm:$0x3f] %v138
    %147 = vst [vmem:[#allocation2 + $0x20] sm:$0x3f] %v139
    %148 = vst [vmem:[#allocation2 + $0x28] sm:$0x3f] %v140
    %149 = vst [vmem:[#allocation2 + $0x30] sm:$0x3f] %v141
    %150 = vst [vmem:[#allocation2 + $0x38] sm:$0x3f] %v142
    %v151 = vld [vmem:[#allocation3] sm:$0xff]
    %v152 = vadd.f32 %v151, %v69
    %153 = vst [vmem:[#allocation3] sm:$0xff] %v152
    // Predicated region
    $region26: #{tpu_custom_call.1} parent=1 // pred_check
      %p154 = pneg %p56
    $region27: #{tpu_custom_call.1} parent=1 // pred_check_branch
      %156 = sbr.rel (%p154) target = $region29
    $region28: #{tpu_custom_call.1} parent=1 // pred_region
      %v157 = vld [vmem:[#allocation2] sm:$0x3f]
      %v158 = vld [vmem:[#allocation2 + $0x8] sm:$0x3f]
      %v159 = vld [vmem:[#allocation2 + $0x10] sm:$0x3f]
      %v160 = vld [vmem:[#allocation2 + $0x18] sm:$0x3f]
      %v161 = vld [vmem:[#allocation2 + $0x20] sm:$0x3f]
      %v162 = vld [vmem:[#allocation2 + $0x28] sm:$0x3f]
      %v163 = vld [vmem:[#allocation2 + $0x30] sm:$0x3f]
      %v164 = vld [vmem:[#allocation2 + $0x38] sm:$0x3f]
      %vm165 = vcmask 1045504
      %v166 = vsel %vm165, %v157, 0.0
      %v167 = vsel %vm165, %v158, 0.0
      %v168 = vadd.f32 %v166, %v167
      %v169 = vsel %vm165, %v159, 0.0
      %v170 = vadd.f32 %v168, %v169
      %v171 = vsel %vm165, %v160, 0.0
      %v172 = vadd.f32 %v170, %v171
      %v173 = vsel %vm165, %v161, 0.0
      %v174 = vadd.f32 %v172, %v173
      %v175 = vsel %vm165, %v162, 0.0
      %v176 = vadd.f32 %v174, %v175
      %v177 = vsel %vm165, %v163, 0.0
      %v178 = vadd.f32 %v176, %v177
      %v179 = vsel %vm165, %v164, 0.0
      %v180 = vadd.f32 %v178, %v179
      %181 = vadd.xlane.f32.xlu0 %v180
      %v182 = vpop.xlane.xlu0 %181
      %v183 = vld [vmem:[#allocation3] sm:$0xff]
      %v185 = vlaneseq
      %v186 = vshrl.u32 %v185, 7
      %v187 = vsub.s32 0, %v186
      %v188 = vrot.slane %v183, %v187
      %v189 = vlaneseq
      %v190 = vshrl.u32 %v189, 7
      %v191 = vsub.s32 1, %v190
      %v192 = vrot.slane %v183, %v191
      %v193 = vlaneseq
      %v194 = vshrl.u32 %v193, 7
      %v195 = vsub.s32 2, %v194
      %v196 = vrot.slane %v183, %v195
      %v197 = vlaneseq
      %v198 = vshrl.u32 %v197, 7
      %v199 = vsub.s32 3, %v198
      %v200 = vrot.slane %v183, %v199
      %v201 = vlaneseq
      %v202 = vshrl.u32 %v201, 7
      %v203 = vsub.s32 4, %v202
      %v204 = vrot.slane %v183, %v203
      %v205 = vlaneseq
      %v206 = vshrl.u32 %v205, 7
      %v207 = vsub.s32 5, %v206
      %v208 = vrot.slane %v183, %v207
      %v209 = vlaneseq
      %v210 = vshrl.u32 %v209, 7
      %v211 = vsub.s32 6, %v210
      %v212 = vrot.slane %v183, %v211
      %v213 = vlaneseq
      %v214 = vshrl.u32 %v213, 7
      %v215 = vsub.s32 7, %v214
      %v216 = vrot.slane %v183, %v215
      %vm225 = vcmask 1040384
      %v226 = vsel %vm225, %v188, 0.0
      %v227 = vsel %vm225, %v192, 0.0
      %v228 = vadd.f32 %v226, %v227
      %v229 = vsel %vm225, %v196, 0.0
      %v230 = vadd.f32 %v228, %v229
      %v231 = vsel %vm225, %v200, 0.0
      %v232 = vadd.f32 %v230, %v231
      %v233 = vsel %vm225, %v204, 0.0
      %v234 = vadd.f32 %v232, %v233
      %v235 = vsel %vm225, %v208, 0.0
      %v236 = vadd.f32 %v234, %v235
      %v237 = vsel %vm225, %v212, 0.0
      %v238 = vadd.f32 %v236, %v237
      %v239 = vsel %vm225, %v216, 0.0
      %v240 = vadd.f32 %v238, %v239
      %241 = vadd.xlane.f32.xlu0 %v240
      %v242 = vpop.xlane.xlu0 %241
      %v243 = vld [vmem:[%s2] sm:$0x3f]
      %v244 = vmul.f32 %v182, %v243
      %vm245 = vcmask 5120
      %v246 = vsel %vm245, %v244, 0.0
      %v247 = vrot.slane %v246, 4
      %v248 = vadd.f32 %v246, %v247
      %v249 = vrot.slane %v248, 2
      %v250 = vadd.f32 %v248, %v249
      %v251 = vrot.slane %v250, 1
      %v252 = vadd.f32 %v250, %v251
      %s253 = sld [smem:[#allocation4]]
      %v254 = vstv %s253
      %v255 = vmul.f32 %v254, %v242
      %v256 = vadd.f32 %v252, %v255
      %s258 = vtos %v256
      %v259 = vstv %s258
      %261 = vst [vmem:[#allocation8] sm:$0xff] %v259
    $region29: #{tpu_custom_call.1} parent=1 // pred_fallthru
      _
    // Predicated region
    $region30: #{tpu_custom_call.1} parent=1 // pred_check
      _
    $region31: #{tpu_custom_call.1} parent=1 // pred_check_branch
      %263 = sbr.rel (0) target = $region33
    $region32: #{tpu_custom_call.1} parent=1 // pred_region
      %s265 = ssub.s32 128, 128
      %266 = vsyncadd [#allocation7], %s265
      %s268 = sshll.u32 [#allocation8], 4
      %s269 = int_to_ptr.vmem [resolvable:$true] %s268
      %271 = dma.vmem_to_hbm [thread:$0]  %s269, 128, %s4, [#allocation7]
    $region33: #{tpu_custom_call.1} parent=1 // pred_fallthru
      _
    // Predicated region
    $region34: #{tpu_custom_call.1} parent=1 // pred_check
      _
    $region35: #{tpu_custom_call.1} parent=1 // pred_check_branch
      %273 = sbr.rel (0) target = $region37
    $region36: #{tpu_custom_call.1} parent=1 // pred_region
      %274 = dma.done [#allocation7], 128
    $region37: #{tpu_custom_call.1} parent=1 // pred_fallthru
      _
    %275 = vsyncpa [#allocation6], 1
    %276 = vsyncpa [#allocation7], 1

</llo_original>
